<compile_context>
chip_gen: v6e
topology: v6e:2x2x1
jax: 0.10.0
libtpu: 0.0.40
codegen_flags: <defaults>
</compile_context>

<pallas_src>
import functools

import jax
import jax.numpy as jnp
from jax.experimental import pallas as pl
from jax.experimental.pallas import tpu as pltpu


# ---------------------------------------------------------------------------
# Kernel
# ---------------------------------------------------------------------------
def _mlp_kernel(x_ref,
                w1_ref, b1_ref, w2_ref, b2_ref, w3_ref, b3_ref, w4_ref, b4_ref,
                wo_ref, bo_ref,
                o_ref):
    """Fused 5-linear MLP: relu(x@W+b) x4, then final linear (no activation).

    Weights are bf16 (MXU operands); accumulation, bias-add and ReLU are f32.
    """
    h = x_ref[...]  # f32 activations

    def layer(h, w_ref, b_ref, relu):
        y = jnp.dot(h.astype(w_ref.dtype), w_ref[...],
                    preferred_element_type=jnp.float32)
        y = y + b_ref[...]                      # (1, out) broadcasts over rows
        return jnp.maximum(y, 0.0) if relu else y

    h = layer(h, w1_ref, b1_ref, True)
    h = layer(h, w2_ref, b2_ref, True)
    h = layer(h, w3_ref, b3_ref, True)
    h = layer(h, w4_ref, b4_ref, True)
    y = layer(h, wo_ref, bo_ref, False)
    o_ref[...] = y.astype(o_ref.dtype)


# ---------------------------------------------------------------------------
# Helpers
# ---------------------------------------------------------------------------
def _round_up(n, m):
    return ((n + m - 1) // m) * m


def _cdiv(a, b):
    return (a + b - 1) // b


def _choose_tm(batch, tm_req):
    """Sanitize the batch tile: multiple of 8, <= padded batch, and (when the
    batch permits) small enough that the grid has >= 2 steps for v7x megacore."""
    bp8 = _round_up(batch, 8)
    tm = min(_round_up(max(tm_req, 8), 8), bp8)
    if bp8 >= 16 and _cdiv(bp8, tm) < 2:
        tm = _round_up(_cdiv(bp8, 2), 8)
    return max(tm, 8)


def prepare_params(params, mxu_dtype=jnp.bfloat16):
    """One-time prep: zero-pad weights/biases to lane-dense (multiple-of-128)
    widths, cast weights to bf16 for the MXU, keep biases f32.

    params: list of 5 (W, b) with W shaped (in, out) [transposed vs PyTorch],
    b shaped (out,). Call once and reuse the result across forwards.
    """
    (w1, b1), (w2, b2), (w3, b3), (w4, b4), (wo, bo) = params
    input_dim = w1.shape[0]
    hidden = w1.shape[1]
    out_dim = wo.shape[1]
    HP = _round_up(hidden, 128)
    OP = _round_up(out_dim, 128)

    def pad_wb(w, b, rows, cols):
        wp = jnp.zeros((rows, cols), mxu_dtype).at[
            : w.shape[0], : w.shape[1]].set(w.astype(mxu_dtype))
        bpad = jnp.zeros((1, cols), jnp.float32).at[
            0, : b.shape[0]].set(b.astype(jnp.float32))
        return wp, bpad

    w1p, b1p = pad_wb(w1, b1, input_dim, HP)
    w2p, b2p = pad_wb(w2, b2, HP, HP)
    w3p, b3p = pad_wb(w3, b3, HP, HP)
    w4p, b4p = pad_wb(w4, b4, HP, HP)
    wop, bop = pad_wb(wo, bo, HP, OP)
    return (w1p, b1p, w2p, b2p, w3p, b3p, w4p, b4p, wop, bop)


# ---------------------------------------------------------------------------
# Jitted forward
# ---------------------------------------------------------------------------
@functools.partial(jax.jit, static_argnames=("out_dim", "tm"))
def four_layer_network(x, prepared_params, *, out_dim, tm=2048):
    """Forward pass. `prepared_params` must come from prepare_params()."""
    (w1, b1, w2, b2, w3, b3, w4, b4, wo, bo) = prepared_params
    batch, input_dim = x.shape
    OP = bo.shape[1]  # lane-dense padded output width (multiple of 128)

    tm_eff = _choose_tm(batch, tm)
    bp = _round_up(batch, tm_eff)

    # Skip cast/pad on the already-aligned f32 path.
    x_f32 = x if x.dtype == jnp.float32 else x.astype(jnp.float32)
    x_pad = x_f32 if bp == batch else jnp.pad(x_f32, ((0, bp - batch), (0, 0)))

    flat_args = (w1, b1, w2, b2, w3, b3, w4, b4, wo, bo)

    grid = (bp // tm_eff,)
    x_spec = pl.BlockSpec((tm_eff, input_dim), lambda i: (i, 0))
    out_spec = pl.BlockSpec((tm_eff, OP), lambda i: (i, 0))
    # Weights/biases: full block, same index every iteration -> VMEM-resident.
    w_specs = [pl.BlockSpec(a.shape, lambda i: (0, 0)) for a in flat_args]

    out_padded = pl.pallas_call(
        _mlp_kernel,
        out_shape=jax.ShapeDtypeStruct((bp, OP), jnp.float32),
        grid_spec=pltpu.PrefetchScalarGridSpec(
            num_scalar_prefetch=0,
            grid=grid,
            in_specs=[x_spec] + w_specs,
            out_specs=out_spec,
        ),
        compiler_params=pltpu.CompilerParams(
            dimension_semantics=("parallel",),
        ),
    )(x_pad, *flat_args)

    # Fused under the same jit: drop batch/lane padding.
    return out_padded[:batch, :out_dim]


# ---------------------------------------------------------------------------
# Reference / init
# ---------------------------------------------------------------------------
def init_params(key, input_dim, output_dim, hidden_units=40):
    """Mimics PyTorch nn.Linear default init (uniform +-1/sqrt(fan_in))."""
    dims = [(input_dim, hidden_units)] + [(hidden_units, hidden_units)] * 3 \
           + [(hidden_units, output_dim)]
    params = []
    for (fan_in, fan_out) in dims:
        key, kw, kb = jax.random.split(key, 3)
        bound = 1.0 / jnp.sqrt(float(fan_in))
        w = jax.random.uniform(kw, (fan_in, fan_out), jnp.float32, -bound, bound)
        b = jax.random.uniform(kb, (fan_out,), jnp.float32, -bound, bound)
        params.append((w, b))
    return params


def reference_forward(x, params):
    h = x
    for w, b in params[:-1]:
        h = jnp.maximum(h @ w + b, 0.0)
    w, b = params[-1]
    return h @ w + b


# ---------------------------------------------------------------------------
# Main
# ---------------------------------------------------------------------------
if __name__ == "__main__":
    key = jax.random.PRNGKey(0)
    input_dim, output_dim, hidden = 16, 10, 40

    params = init_params(key, input_dim, output_dim, hidden)
    prepared = prepare_params(params)  # one-time pad + bf16 cast

    # Small test (grid = 1 step).
    key, kx = jax.random.split(key)
    x_small = jax.random.normal(kx, (8, input_dim), jnp.float32)
    out_small = jax.block_until_ready(
        four_layer_network(x_small, prepared, out_dim=output_dim))
    ref_small = reference_forward(x_small, params)
    assert out_small.shape == (8, output_dim)
    # bf16 MXU operands -> tolerances relaxed vs pure-f32 reference.
    assert jnp.allclose(out_small, ref_small, atol=2e-2, rtol=2e-2), \
        "mismatch vs JAX reference (small batch)"

    # Larger, non-aligned batch: exercises batch padding + multi-step grid
    # (>= 2 steps so v7x megacore can shard the batch axis).
    key, kx2 = jax.random.split(key)
    x_big = jax.random.normal(kx2, (300, input_dim), jnp.float32)
    out_big = jax.block_until_ready(
        four_layer_network(x_big, prepared, out_dim=output_dim))
    ref_big = reference_forward(x_big, params)
    assert out_big.shape == (300, output_dim)
    assert jnp.allclose(out_big, ref_big, atol=2e-2, rtol=2e-2), \
        "mismatch vs JAX reference (large batch)"

    print("KERNEL_OK")
</pallas_src>

<mosaic_0001>
module attributes {stable_mosaic.version = 11 : i64} {
  func.func @_mlp_kernel(%arg0: i32, %arg1: memref<8x16xf32, #tpu.memory_space<vmem>>, %arg2: memref<16x128xbf16, #tpu.memory_space<vmem>>, %arg3: memref<1x128xf32, #tpu.memory_space<vmem>>, %arg4: memref<128x128xbf16, #tpu.memory_space<vmem>>, %arg5: memref<1x128xf32, #tpu.memory_space<vmem>>, %arg6: memref<128x128xbf16, #tpu.memory_space<vmem>>, %arg7: memref<1x128xf32, #tpu.memory_space<vmem>>, %arg8: memref<128x128xbf16, #tpu.memory_space<vmem>>, %arg9: memref<1x128xf32, #tpu.memory_space<vmem>>, %arg10: memref<128x128xbf16, #tpu.memory_space<vmem>>, %arg11: memref<1x128xf32, #tpu.memory_space<vmem>>, %arg12: memref<8x128xf32, #tpu.memory_space<vmem>>) attributes {dimension_semantics = [#tpu.dimension_semantics<parallel>], iteration_bounds = array<i64: 1>, scalar_prefetch = 0 : i64, scratch_operands = 0 : i64, tpu.core_type = #tpu.core_type<tc>, window_params = [{transform_indices = @transform_0, window_bounds = array<i64: 8, 16>}, {pipeline_mode = #tpu.pipeline_mode<synchronous>, transform_indices = @transform_1, window_bounds = array<i64: 16, 128>}, {pipeline_mode = #tpu.pipeline_mode<synchronous>, transform_indices = @transform_2, window_bounds = array<i64: 1, 128>}, {pipeline_mode = #tpu.pipeline_mode<synchronous>, transform_indices = @transform_3, window_bounds = array<i64: 128, 128>}, {pipeline_mode = #tpu.pipeline_mode<synchronous>, transform_indices = @transform_4, window_bounds = array<i64: 1, 128>}, {pipeline_mode = #tpu.pipeline_mode<synchronous>, transform_indices = @transform_5, window_bounds = array<i64: 128, 128>}, {pipeline_mode = #tpu.pipeline_mode<synchronous>, transform_indices = @transform_6, window_bounds = array<i64: 1, 128>}, {pipeline_mode = #tpu.pipeline_mode<synchronous>, transform_indices = @transform_7, window_bounds = array<i64: 128, 128>}, {pipeline_mode = #tpu.pipeline_mode<synchronous>, transform_indices = @transform_8, window_bounds = array<i64: 1, 128>}, {pipeline_mode = #tpu.pipeline_mode<synchronous>, transform_indices = @transform_9, window_bounds = array<i64: 128, 128>}, {pipeline_mode = #tpu.pipeline_mode<synchronous>, transform_indices = @transform_10, window_bounds = array<i64: 1, 128>}, {transform_indices = @transform_11, window_bounds = array<i64: 8, 128>}]} {
    %c0 = arith.constant 0 : index
    %c0_0 = arith.constant 0 : index
    %0 = vector.load %arg1[%c0, %c0_0] : memref<8x16xf32, #tpu.memory_space<vmem>>, vector<8x16xf32>
    %1 = arith.truncf %0 : vector<8x16xf32> to vector<8x16xbf16>
    %c0_1 = arith.constant 0 : index
    %c0_2 = arith.constant 0 : index
    %2 = vector.load %arg2[%c0_1, %c0_2] : memref<16x128xbf16, #tpu.memory_space<vmem>>, vector<16x128xbf16>
    %cst = arith.constant dense<0.000000e+00> : vector<8x128xf32>
    %3 = tpu.matmul %1, %2, %cst {dimension_numbers = #tpu.dot_dimension_numbers<[1], [0], [0], [1], [0, 0, 1, 1], [], []>} : vector<8x16xbf16>, vector<16x128xbf16>, vector<8x128xf32> -> vector<8x128xf32>
    %c0_3 = arith.constant 0 : index
    %c0_4 = arith.constant 0 : index
    %4 = vector.load %arg3[%c0_3, %c0_4] : memref<1x128xf32, #tpu.memory_space<vmem>>, vector<1x128xf32>
    %5 = vector.broadcast %4 : vector<1x128xf32> to vector<8x128xf32>
    %6 = arith.addf %3, %5 : vector<8x128xf32>
    %cst_5 = arith.constant 0.000000e+00 : f32
    %7 = vector.broadcast %cst_5 : f32 to vector<8x128xf32>
    %8 = arith.maximumf %6, %7 : vector<8x128xf32>
    %9 = arith.truncf %8 : vector<8x128xf32> to vector<8x128xbf16>
    %c0_6 = arith.constant 0 : index
    %c0_7 = arith.constant 0 : index
    %10 = vector.load %arg4[%c0_6, %c0_7] : memref<128x128xbf16, #tpu.memory_space<vmem>>, vector<128x128xbf16>
    %cst_8 = arith.constant dense<0.000000e+00> : vector<8x128xf32>
    %11 = tpu.matmul %9, %10, %cst_8 {dimension_numbers = #tpu.dot_dimension_numbers<[1], [0], [0], [1], [0, 0, 1, 1], [], []>} : vector<8x128xbf16>, vector<128x128xbf16>, vector<8x128xf32> -> vector<8x128xf32>
    %c0_9 = arith.constant 0 : index
    %c0_10 = arith.constant 0 : index
    %12 = vector.load %arg5[%c0_9, %c0_10] : memref<1x128xf32, #tpu.memory_space<vmem>>, vector<1x128xf32>
    %13 = vector.broadcast %12 : vector<1x128xf32> to vector<8x128xf32>
    %14 = arith.addf %11, %13 : vector<8x128xf32>
    %cst_11 = arith.constant 0.000000e+00 : f32
    %15 = vector.broadcast %cst_11 : f32 to vector<8x128xf32>
    %16 = arith.maximumf %14, %15 : vector<8x128xf32>
    %17 = arith.truncf %16 : vector<8x128xf32> to vector<8x128xbf16>
    %c0_12 = arith.constant 0 : index
    %c0_13 = arith.constant 0 : index
    %18 = vector.load %arg6[%c0_12, %c0_13] : memref<128x128xbf16, #tpu.memory_space<vmem>>, vector<128x128xbf16>
    %cst_14 = arith.constant dense<0.000000e+00> : vector<8x128xf32>
    %19 = tpu.matmul %17, %18, %cst_14 {dimension_numbers = #tpu.dot_dimension_numbers<[1], [0], [0], [1], [0, 0, 1, 1], [], []>} : vector<8x128xbf16>, vector<128x128xbf16>, vector<8x128xf32> -> vector<8x128xf32>
    %c0_15 = arith.constant 0 : index
    %c0_16 = arith.constant 0 : index
    %20 = vector.load %arg7[%c0_15, %c0_16] : memref<1x128xf32, #tpu.memory_space<vmem>>, vector<1x128xf32>
    %21 = vector.broadcast %20 : vector<1x128xf32> to vector<8x128xf32>
    %22 = arith.addf %19, %21 : vector<8x128xf32>
    %cst_17 = arith.constant 0.000000e+00 : f32
    %23 = vector.broadcast %cst_17 : f32 to vector<8x128xf32>
    %24 = arith.maximumf %22, %23 : vector<8x128xf32>
    %25 = arith.truncf %24 : vector<8x128xf32> to vector<8x128xbf16>
    %c0_18 = arith.constant 0 : index
    %c0_19 = arith.constant 0 : index
    %26 = vector.load %arg8[%c0_18, %c0_19] : memref<128x128xbf16, #tpu.memory_space<vmem>>, vector<128x128xbf16>
    %cst_20 = arith.constant dense<0.000000e+00> : vector<8x128xf32>
    %27 = tpu.matmul %25, %26, %cst_20 {dimension_numbers = #tpu.dot_dimension_numbers<[1], [0], [0], [1], [0, 0, 1, 1], [], []>} : vector<8x128xbf16>, vector<128x128xbf16>, vector<8x128xf32> -> vector<8x128xf32>
    %c0_21 = arith.constant 0 : index
    %c0_22 = arith.constant 0 : index
    %28 = vector.load %arg9[%c0_21, %c0_22] : memref<1x128xf32, #tpu.memory_space<vmem>>, vector<1x128xf32>
    %29 = vector.broadcast %28 : vector<1x128xf32> to vector<8x128xf32>
    %30 = arith.addf %27, %29 : vector<8x128xf32>
    %cst_23 = arith.constant 0.000000e+00 : f32
    %31 = vector.broadcast %cst_23 : f32 to vector<8x128xf32>
    %32 = arith.maximumf %30, %31 : vector<8x128xf32>
    %33 = arith.truncf %32 : vector<8x128xf32> to vector<8x128xbf16>
    %c0_24 = arith.constant 0 : index
    %c0_25 = arith.constant 0 : index
    %34 = vector.load %arg10[%c0_24, %c0_25] : memref<128x128xbf16, #tpu.memory_space<vmem>>, vector<128x128xbf16>
    %cst_26 = arith.constant dense<0.000000e+00> : vector<8x128xf32>
    %35 = tpu.matmul %33, %34, %cst_26 {dimension_numbers = #tpu.dot_dimension_numbers<[1], [0], [0], [1], [0, 0, 1, 1], [], []>} : vector<8x128xbf16>, vector<128x128xbf16>, vector<8x128xf32> -> vector<8x128xf32>
    %c0_27 = arith.constant 0 : index
    %c0_28 = arith.constant 0 : index
    %36 = vector.load %arg11[%c0_27, %c0_28] : memref<1x128xf32, #tpu.memory_space<vmem>>, vector<1x128xf32>
    %37 = vector.broadcast %36 : vector<1x128xf32> to vector<8x128xf32>
    %38 = arith.addf %35, %37 : vector<8x128xf32>
    %c0_29 = arith.constant 0 : index
    %c0_30 = arith.constant 0 : index
    %39 = vector.load %arg12[%c0_29, %c0_30] : memref<8x128xf32, #tpu.memory_space<vmem>>, vector<8x128xf32>
    tpu.vector_store %arg12[%c0_29, %c0_30], %38 {strides = array<i32>} : memref<8x128xf32, #tpu.memory_space<vmem>>, vector<8x128xf32>,
    return
  }
  func.func @transform_0(%arg0: i32) -> (i32, i32) {
    %c0_i32 = arith.constant 0 : i32
    %c0_i32_0 = arith.constant 0 : i32
    return %arg0, %c0_i32 : i32, i32
  }
  func.func @transform_1(%arg0: i32) -> (i32, i32) {
    %c0_i32 = arith.constant 0 : i32
    %c0_i32_0 = arith.constant 0 : i32
    %c0_i32_1 = arith.constant 0 : i32
    return %c0_i32, %c0_i32_0 : i32, i32
  }
  func.func @transform_2(%arg0: i32) -> (i32, i32) {
    %c0_i32 = arith.constant 0 : i32
    %c0_i32_0 = arith.constant 0 : i32
    %c0_i32_1 = arith.constant 0 : i32
    return %c0_i32, %c0_i32_0 : i32, i32
  }
  func.func @transform_3(%arg0: i32) -> (i32, i32) {
    %c0_i32 = arith.constant 0 : i32
    %c0_i32_0 = arith.constant 0 : i32
    %c0_i32_1 = arith.constant 0 : i32
    return %c0_i32, %c0_i32_0 : i32, i32
  }
  func.func @transform_4(%arg0: i32) -> (i32, i32) {
    %c0_i32 = arith.constant 0 : i32
    %c0_i32_0 = arith.constant 0 : i32
    %c0_i32_1 = arith.constant 0 : i32
    return %c0_i32, %c0_i32_0 : i32, i32
  }
  func.func @transform_5(%arg0: i32) -> (i32, i32) {
    %c0_i32 = arith.constant 0 : i32
    %c0_i32_0 = arith.constant 0 : i32
    %c0_i32_1 = arith.constant 0 : i32
    return %c0_i32, %c0_i32_0 : i32, i32
  }
  func.func @transform_6(%arg0: i32) -> (i32, i32) {
    %c0_i32 = arith.constant 0 : i32
    %c0_i32_0 = arith.constant 0 : i32
    %c0_i32_1 = arith.constant 0 : i32
    return %c0_i32, %c0_i32_0 : i32, i32
  }
  func.func @transform_7(%arg0: i32) -> (i32, i32) {
    %c0_i32 = arith.constant 0 : i32
    %c0_i32_0 = arith.constant 0 : i32
    %c0_i32_1 = arith.constant 0 : i32
    return %c0_i32, %c0_i32_0 : i32, i32
  }
  func.func @transform_8(%arg0: i32) -> (i32, i32) {
    %c0_i32 = arith.constant 0 : i32
    %c0_i32_0 = arith.constant 0 : i32
    %c0_i32_1 = arith.constant 0 : i32
    return %c0_i32, %c0_i32_0 : i32, i32
  }
  func.func @transform_9(%arg0: i32) -> (i32, i32) {
    %c0_i32 = arith.constant 0 : i32
    %c0_i32_0 = arith.constant 0 : i32
    %c0_i32_1 = arith.constant 0 : i32
    return %c0_i32, %c0_i32_0 : i32, i32
  }
  func.func @transform_10(%arg0: i32) -> (i32, i32) {
    %c0_i32 = arith.constant 0 : i32
    %c0_i32_0 = arith.constant 0 : i32
    %c0_i32_1 = arith.constant 0 : i32
    return %c0_i32, %c0_i32_0 : i32, i32
  }
  func.func @transform_11(%arg0: i32) -> (i32, i32) {
    %c0_i32 = arith.constant 0 : i32
    %c0_i32_0 = arith.constant 0 : i32
    return %arg0, %c0_i32 : i32, i32
  }
}

</mosaic_0001>

<llo_original>
// kernel: four_layer_network.1
$region0: #{four_layer_network.1}
  #allocation0 [shape = 'u32[]', space=smem, size = 0x4, offset = 0x4, fixed_abs, tag = 'smem constant byte address 0x4 - core index']
  #allocation1 [shape = 'u32[144,128]{1,0:T(1,128)}', space=vmem, size = 0x12000, scoped, tag = 'internal scratch']
  %s0 = inlined_call_operand.hbm [shape: f32[8,16], index: 0, kind: input, shape index: {}]
  %s1 = inlined_call_operand.hbm [shape: bf16[16,128], index: 1, kind: input, shape index: {}]
  %s2 = inlined_call_operand.vmem [shape: f32[1,128], index: 2, kind: input, shape index: {}]
  %s3 = inlined_call_operand.hbm [shape: bf16[128,128], index: 3, kind: input, shape index: {}]
  %s4 = inlined_call_operand.vmem [shape: f32[1,128], index: 4, kind: input, shape index: {}]
  %s5 = inlined_call_operand.hbm [shape: bf16[128,128], index: 5, kind: input, shape index: {}]
  %s6 = inlined_call_operand.vmem [shape: f32[1,128], index: 6, kind: input, shape index: {}]
  %s7 = inlined_call_operand.hbm [shape: bf16[128,128], index: 7, kind: input, shape index: {}]
  %s8 = inlined_call_operand.vmem [shape: f32[1,128], index: 8, kind: input, shape index: {}]
  %s9 = inlined_call_operand.hbm [shape: bf16[128,128], index: 9, kind: input, shape index: {}]
  %s10 = inlined_call_operand.vmem [shape: f32[1,128], index: 10, kind: input, shape index: {}]
  %s11 = inlined_call_operand.hbm [shape: f32[8,128], index: 11, kind: output, shape index: {}]
  %s12 = sld [smem:[#allocation0]]
  $region78: #{four_layer_network.1} parent=0
    _
  %s14 = ssub.s32 1, %s12
  %s15 = scalar_select 0, %s14, %s12
  $region1: #{four_layer_network.1} parent=0
    #allocation2 [shape = 'u8[4096]{0}', space=vmem, size = 0x1000, scoped, tag = 'input window, operand 0, single buffered']
    #allocation3 [shape = 's32[1]{0}', space=sflag, size = 0x4, scoped, tag = 'scoped memory for four_layer_network.1']
    #allocation4 [shape = 's32[1]{0}', space=sflag, size = 0x4, scoped, tag = 'scoped memory for four_layer_network.1']
    #allocation5 [shape = 'u8[4096]{0}', space=vmem, size = 0x1000, scoped, tag = 'input window, operand 1, single buffered']
    #allocation6 [shape = 's32[1]{0}', space=sflag, size = 0x4, scoped, tag = 'scoped memory for four_layer_network.1']
    #allocation7 [shape = 'u8[32768]{0}', space=vmem, size = 0x8000, scoped, tag = 'input window, operand 3, single buffered']
    #allocation8 [shape = 'u8[32768]{0}', space=vmem, size = 0x8000, scoped, tag = 'input window, operand 5, single buffered']
    #allocation9 [shape = 's32[1]{0}', space=sflag, size = 0x4, scoped, tag = 'scoped memory for four_layer_network.1']
    #allocation10 [shape = 'u8[32768]{0}', space=vmem, size = 0x8000, scoped, tag = 'input window, operand 7, single buffered']
    #allocation11 [shape = 'u8[32768]{0}', space=vmem, size = 0x8000, scoped, tag = 'input window, operand 9, single buffered']
    #allocation12 [shape = 's32[1]{0}', space=sflag, size = 0x4, scoped, tag = 'scoped memory for four_layer_network.1']
    #allocation13 [shape = 'u8[4096]{0}', space=vmem, size = 0x1000, scoped, tag = 'output window, operand 0, single buffered']
    %16 = vsyncpa [#allocation3], 0
    %17 = vsyncpa [#allocation6], 0
    %18 = vsyncpa [#allocation9], 0
    %19 = vsyncpa [#allocation12], 0
    %20 = vsyncpa [#allocation4], 0
    // Predicated region
    $region2: #{four_layer_network.1} parent=1 // pred_check
      _
    $region3: #{four_layer_network.1} parent=1 // pred_check_branch
      %22 = sbr.rel (0) target = $region5
    $region4: #{four_layer_network.1} parent=1 // pred_region
      %s24 = ssub.s32 128, 128
      %25 = vsyncadd [#allocation3], %s24
      %s27 = sshll.u32 [#allocation2], 4
      %s28 = int_to_ptr.vmem [resolvable:$true] %s27
      %30 = dma.hbm_to_vmem [thread:$0]  %s0, 128, %s28, [#allocation3]
    $region5: #{four_layer_network.1} parent=1 // pred_fallthru
      _
    // Predicated region
    $region6: #{four_layer_network.1} parent=1 // pred_check
      _
    $region7: #{four_layer_network.1} parent=1 // pred_check_branch
      %32 = sbr.rel (0) target = $region9
    $region8: #{four_layer_network.1} parent=1 // pred_region
      %s34 = ssub.s32 128, 128
      %35 = vsyncadd [#allocation6], %s34
      %s36 = sshll.u32 [#allocation5], 4
      %s37 = int_to_ptr.vmem [resolvable:$true] %s36
      %42 = dma.hbm_to_vmem [thread:$0]  %s1, 128, %s37, [#allocation6], 64, 64, 4
    $region9: #{four_layer_network.1} parent=1 // pred_fallthru
      _
    // Predicated region
    $region10: #{four_layer_network.1} parent=1 // pred_check
      _
    $region11: #{four_layer_network.1} parent=1 // pred_check_branch
      %44 = sbr.rel (0) target = $region13
    $region12: #{four_layer_network.1} parent=1 // pred_region
      _
    $region13: #{four_layer_network.1} parent=1 // pred_fallthru
      _
    // Predicated region
    $region14: #{four_layer_network.1} parent=1 // pred_check
      _
    $region15: #{four_layer_network.1} parent=1 // pred_check_branch
      %46 = sbr.rel (0) target = $region17
    $region16: #{four_layer_network.1} parent=1 // pred_region
      %s48 = ssub.s32 1024, 1024
      %49 = vsyncadd [#allocation6], %s48
      %s50 = sshll.u32 [#allocation7], 4
      %s51 = int_to_ptr.vmem [resolvable:$true] %s50
      %56 = dma.hbm_to_vmem [thread:$0]  %s3, 1024, %s51, [#allocation6], 64, 64, 4
    $region17: #{four_layer_network.1} parent=1 // pred_fallthru
      _
    // Predicated region
    $region18: #{four_layer_network.1} parent=1 // pred_check
      _
    $region19: #{four_layer_network.1} parent=1 // pred_check_branch
      %58 = sbr.rel (0) target = $region21
    $region20: #{four_layer_network.1} parent=1 // pred_region
      _
    $region21: #{four_layer_network.1} parent=1 // pred_fallthru
      _
    // Predicated region
    $region22: #{four_layer_network.1} parent=1 // pred_check
      _
    $region23: #{four_layer_network.1} parent=1 // pred_check_branch
      %60 = sbr.rel (0) target = $region25
    $region24: #{four_layer_network.1} parent=1 // pred_region
      %s62 = ssub.s32 1024, 1024
      %63 = vsyncadd [#allocation9], %s62
      %s64 = sshll.u32 [#allocation8], 4
      %s65 = int_to_ptr.vmem [resolvable:$true] %s64
      %70 = dma.hbm_to_vmem [thread:$0]  %s5, 1024, %s65, [#allocation9], 64, 64, 4
    $region25: #{four_layer_network.1} parent=1 // pred_fallthru
      _
    // Predicated region
    $region26: #{four_layer_network.1} parent=1 // pred_check
      _
    $region27: #{four_layer_network.1} parent=1 // pred_check_branch
      %72 = sbr.rel (0) target = $region29
    $region28: #{four_layer_network.1} parent=1 // pred_region
      _
    $region29: #{four_layer_network.1} parent=1 // pred_fallthru
      _
    // Predicated region
    $region30: #{four_layer_network.1} parent=1 // pred_check
      _
    $region31: #{four_layer_network.1} parent=1 // pred_check_branch
      %74 = sbr.rel (0) target = $region33
    $region32: #{four_layer_network.1} parent=1 // pred_region
      %s76 = ssub.s32 1024, 1024
      %77 = vsyncadd [#allocation9], %s76
      %s78 = sshll.u32 [#allocation10], 4
      %s79 = int_to_ptr.vmem [resolvable:$true] %s78
      %84 = dma.hbm_to_vmem [thread:$0]  %s7, 1024, %s79, [#allocation9], 64, 64, 4
    $region33: #{four_layer_network.1} parent=1 // pred_fallthru
      _
    // Predicated region
    $region34: #{four_layer_network.1} parent=1 // pred_check
      _
    $region35: #{four_layer_network.1} parent=1 // pred_check_branch
      %86 = sbr.rel (0) target = $region37
    $region36: #{four_layer_network.1} parent=1 // pred_region
      _
    $region37: #{four_layer_network.1} parent=1 // pred_fallthru
      _
    // Predicated region
    $region38: #{four_layer_network.1} parent=1 // pred_check
      _
    $region39: #{four_layer_network.1} parent=1 // pred_check_branch
      %88 = sbr.rel (0) target = $region41
    $region40: #{four_layer_network.1} parent=1 // pred_region
      %s90 = ssub.s32 1024, 1024
      %91 = vsyncadd [#allocation12], %s90
      %s92 = sshll.u32 [#allocation11], 4
      %s93 = int_to_ptr.vmem [resolvable:$true] %s92
      %98 = dma.hbm_to_vmem [thread:$0]  %s9, 1024, %s93, [#allocation12], 64, 64, 4
    $region41: #{four_layer_network.1} parent=1 // pred_fallthru
      _
    // Predicated region
    $region42: #{four_layer_network.1} parent=1 // pred_check
      _
    $region43: #{four_layer_network.1} parent=1 // pred_check_branch
      %100 = sbr.rel (0) target = $region45
    $region44: #{four_layer_network.1} parent=1 // pred_region
      _
    $region45: #{four_layer_network.1} parent=1 // pred_fallthru
      _
    // Predicated region
    $region46: #{four_layer_network.1} parent=1 // pred_check
      _
    $region47: #{four_layer_network.1} parent=1 // pred_check_branch
      %102 = sbr.rel (0) target = $region49
    $region48: #{four_layer_network.1} parent=1 // pred_region
      %103 = dma.done [#allocation3], 128
    $region49: #{four_layer_network.1} parent=1 // pred_fallthru
      _
    // Predicated region
    $region50: #{four_layer_network.1} parent=1 // pred_check
      _
    $region51: #{four_layer_network.1} parent=1 // pred_check_branch
      %105 = sbr.rel (0) target = $region53
    $region52: #{four_layer_network.1} parent=1 // pred_region
      %106 = dma.done [#allocation6], 128
    $region53: #{four_layer_network.1} parent=1 // pred_fallthru
      _
    // Predicated region
    $region54: #{four_layer_network.1} parent=1 // pred_check
      _
    $region55: #{four_layer_network.1} parent=1 // pred_check_branch
      %108 = sbr.rel (0) target = $region57
    $region56: #{four_layer_network.1} parent=1 // pred_region
      %109 = dma.done [#allocation6], 1024
    $region57: #{four_layer_network.1} parent=1 // pred_fallthru
      _
    // Predicated region
    $region58: #{four_layer_network.1} parent=1 // pred_check
      _
    $region59: #{four_layer_network.1} parent=1 // pred_check_branch
      %111 = sbr.rel (0) target = $region61
    $region60: #{four_layer_network.1} parent=1 // pred_region
      %112 = dma.done [#allocation9], 1024
    $region61: #{four_layer_network.1} parent=1 // pred_fallthru
      _
    // Predicated region
    $region62: #{four_layer_network.1} parent=1 // pred_check
      _
    $region63: #{four_layer_network.1} parent=1 // pred_check_branch
      %114 = sbr.rel (0) target = $region65
    $region64: #{four_layer_network.1} parent=1 // pred_region
      %115 = dma.done [#allocation9], 1024
    $region65: #{four_layer_network.1} parent=1 // pred_fallthru
      _
    // Predicated region
    $region66: #{four_layer_network.1} parent=1 // pred_check
      _
    $region67: #{four_layer_network.1} parent=1 // pred_check_branch
      %117 = sbr.rel (0) target = $region69
    $region68: #{four_layer_network.1} parent=1 // pred_region
      %118 = dma.done [#allocation12], 1024
    $region69: #{four_layer_network.1} parent=1 // pred_fallthru
      _
    %v120 = vld [vmem:[#allocation2] sm:$0xff]
    %v121 = vpack.c.bf16 %v120, %v120
    %v122 = vld [vmem:[#allocation5] sm:$0xf]
    %v123 = vld [vmem:[#allocation5 + $0x4] sm:$0xf]
    %v124 = vld [vmem:[%s2] sm:$0x1]
    %v126 = vlaneseq
    %v127 = vshrl.u32 %v126, 7
    %v128 = vsub.s32 0, %v127
    %v129 = vrot.slane %v124, %v128
    %v133 = vunpack.c.l.b16 %v122
    %v134 = vunpack.c.l.b16 %v123
    %v135 = vpack.c.b16 %v134, %v133
    %vm137 = vcmask 130048
    %v139 = vsel %vm137, %v121, 0
    %141 = vmatprep.subr.bf16.mxu0 0
    %142 = vmatpush1.bf16.msra.mxu0 0
    %143 = vmatprep.subr.bf16.mxu0 0
    %144 = vmatpush1.bf16.msra.mxu0 0
    %145 = vmatprep.subr.bf16.mxu0 0
    %146 = vmatpush1.bf16.msra.mxu0 0
    %147 = vmatprep.subr.bf16.mxu0 0
    %148 = vmatpush1.bf16.msra.mxu0 0
    %149 = vmatprep.subr.bf16.mxu0 0
    %150 = vmatpush1.bf16.msra.mxu0 0
    %151 = vmatprep.subr.bf16.mxu0 0
    %152 = vmatpush1.bf16.msra.mxu0 0
    %153 = vmatprep.subr.bf16.mxu0 0
    %154 = vmatpush1.bf16.msra.mxu0 0
    %155 = vmatprep.subr.bf16.mxu0 0
    %156 = vmatpush1.bf16.msra.mxu0 %v135
    %157 = vmatprep.subr.bf16.mxu0 0
    %158 = vmatpush2.bf16.msra.mxu0 0
    %159 = vmatprep.subr.bf16.mxu0 0
    %160 = vmatpush2.bf16.msra.mxu0 0
    %161 = vmatprep.subr.bf16.mxu0 0
    %162 = vmatpush2.bf16.msra.mxu0 0
    %163 = vmatprep.subr.bf16.mxu0 0
    %164 = vmatpush2.bf16.msra.mxu0 0
    %165 = vmatprep.subr.bf16.mxu0 0
    %166 = vmatpush2.bf16.msra.mxu0 0
    %167 = vmatprep.subr.bf16.mxu0 0
    %168 = vmatpush2.bf16.msra.mxu0 0
    %169 = vmatprep.subr.bf16.mxu0 0
    %170 = vmatpush2.bf16.msra.mxu0 0
    %171 = vmatprep.subr.bf16.mxu0 0
    %172 = vmatpush2.bf16.msra.mxu0 0
    %173 = vmatprep.mubr.bf16.mxu0 0
    %174 = vmatmul.mubr.bf16.gmra.mxu0 %v139
    %v175 = vpop.f32.mrf.mxu0
    %v176 = vadd.f32 %v129, %v175
    %v177 = vpop.f32.mrf.mxu0
    %v178 = vpop.f32.mrf.mxu0
    %v179 = vpop.f32.mrf.mxu0
    %180 = vdwg.mxu0
    %v181 = vmax.f32 %v176, 0.0
    %v182 = vpack.c.bf16 %v181, %v181
    %v183 = vld [vmem:[#allocation7] sm:$0xf]
    %v184 = vld [vmem:[#allocation7 + $0x4] sm:$0xf]
    %v185 = vld [vmem:[#allocation7 + $0x8] sm:$0xf]
    %v186 = vld [vmem:[#allocation7 + $0xc] sm:$0xf]
    %v187 = vld [vmem:[#allocation7 + $0x10] sm:$0xf]
    %v188 = vld [vmem:[#allocation7 + $0x14] sm:$0xf]
    %v189 = vld [vmem:[#allocation7 + $0x18] sm:$0xf]
    %v190 = vld [vmem:[#allocation7 + $0x1c] sm:$0xf]
    %v191 = vld [vmem:[#allocation7 + $0x20] sm:$0xf]
    %v192 = vld [vmem:[#allocation7 + $0x24] sm:$0xf]
    %v193 = vld [vmem:[#allocation7 + $0x28] sm:$0xf]
    %v194 = vld [vmem:[#allocation7 + $0x2c] sm:$0xf]
    %v195 = vld [vmem:[#allocation7 + $0x30] sm:$0xf]
    %v196 = vld [vmem:[#allocation7 + $0x34] sm:$0xf]
    %v197 = vld [vmem:[#allocation7 + $0x38] sm:$0xf]
    %v198 = vld [vmem:[#allocation7 + $0x3c] sm:$0xf]
    %v199 = vld [vmem:[%s4] sm:$0x1]
    %v201 = vlaneseq
    %v202 = vshrl.u32 %v201, 7
    %v203 = vsub.s32 0, %v202
    %v204 = vrot.slane %v199, %v203
    %v222 = vunpack.c.l.b16 %v183
    %v223 = vunpack.c.l.b16 %v184
    %v224 = vunpack.c.l.b16 %v185
    %v225 = vunpack.c.l.b16 %v186
    %v226 = vunpack.c.l.b16 %v187
    %v227 = vunpack.c.l.b16 %v188
    %v228 = vunpack.c.l.b16 %v189
    %v229 = vunpack.c.l.b16 %v190
    %v230 = vunpack.c.l.b16 %v191
    %v231 = vunpack.c.l.b16 %v192
    %v232 = vunpack.c.l.b16 %v193
    %v233 = vunpack.c.l.b16 %v194
    %v234 = vunpack.c.l.b16 %v195
    %v235 = vunpack.c.l.b16 %v196
    %v236 = vunpack.c.l.b16 %v197
    %v237 = vunpack.c.l.b16 %v198
    %v238 = vpack.c.b16 %v223, %v222
    %v239 = vpack.c.b16 %v225, %v224
    %v240 = vpack.c.b16 %v227, %v226
    %v241 = vpack.c.b16 %v229, %v228
    %v242 = vpack.c.b16 %v231, %v230
    %v243 = vpack.c.b16 %v233, %v232
    %v244 = vpack.c.b16 %v235, %v234
    %v245 = vpack.c.b16 %v237, %v236
    %254 = vmatprep.subr.bf16.mxu0 0
    %255 = vmatpush1.bf16.msra.mxu0 %v245
    %256 = vmatprep.subr.bf16.mxu0 0
    %257 = vmatpush1.bf16.msra.mxu0 %v244
    %258 = vmatprep.subr.bf16.mxu0 0
    %259 = vmatpush1.bf16.msra.mxu0 %v243
    %260 = vmatprep.subr.bf16.mxu0 0
    %261 = vmatpush1.bf16.msra.mxu0 %v242
    %262 = vmatprep.subr.bf16.mxu0 0
    %263 = vmatpush1.bf16.msra.mxu0 %v241
    %264 = vmatprep.subr.bf16.mxu0 0
    %265 = vmatpush1.bf16.msra.mxu0 %v240
    %266 = vmatprep.subr.bf16.mxu0 0
    %267 = vmatpush1.bf16.msra.mxu0 %v239
    %268 = vmatprep.subr.bf16.mxu0 0
    %269 = vmatpush1.bf16.msra.mxu0 %v238
    %270 = vmatprep.subr.bf16.mxu0 0
    %271 = vmatpush2.bf16.msra.mxu0 0
    %272 = vmatprep.subr.bf16.mxu0 0
    %273 = vmatpush2.bf16.msra.mxu0 0
    %274 = vmatprep.subr.bf16.mxu0 0
    %275 = vmatpush2.bf16.msra.mxu0 0
    %276 = vmatprep.subr.bf16.mxu0 0
    %277 = vmatpush2.bf16.msra.mxu0 0
    %278 = vmatprep.subr.bf16.mxu0 0
    %279 = vmatpush2.bf16.msra.mxu0 0
    %280 = vmatprep.subr.bf16.mxu0 0
    %281 = vmatpush2.bf16.msra.mxu0 0
    %282 = vmatprep.subr.bf16.mxu0 0
    %283 = vmatpush2.bf16.msra.mxu0 0
    %284 = vmatprep.subr.bf16.mxu0 0
    %285 = vmatpush2.bf16.msra.mxu0 0
    %286 = vmatprep.mubr.bf16.mxu0 0
    %287 = vmatmul.mubr.bf16.gmra.mxu0 %v182
    %v288 = vpop.f32.mrf.mxu0
    %v289 = vadd.f32 %v204, %v288
    %v290 = vpop.f32.mrf.mxu0
    %v291 = vpop.f32.mrf.mxu0
    %v292 = vpop.f32.mrf.mxu0
    %293 = vdwg.mxu0
    %v294 = vmax.f32 %v289, 0.0
    %v295 = vpack.c.bf16 %v294, %v294
    %v296 = vld [vmem:[#allocation8] sm:$0xf]
    %v297 = vld [vmem:[#allocation8 + $0x4] sm:$0xf]
    %v298 = vld [vmem:[#allocation8 + $0x8] sm:$0xf]
    %v299 = vld [vmem:[#allocation8 + $0xc] sm:$0xf]
    %v300 = vld [vmem:[#allocation8 + $0x10] sm:$0xf]
    %v301 = vld [vmem:[#allocation8 + $0x14] sm:$0xf]
    %v302 = vld [vmem:[#allocation8 + $0x18] sm:$0xf]
    %v303 = vld [vmem:[#allocation8 + $0x1c] sm:$0xf]
    %v304 = vld [vmem:[#allocation8 + $0x20] sm:$0xf]
    %v305 = vld [vmem:[#allocation8 + $0x24] sm:$0xf]
    %v306 = vld [vmem:[#allocation8 + $0x28] sm:$0xf]
    %v307 = vld [vmem:[#allocation8 + $0x2c] sm:$0xf]
    %v308 = vld [vmem:[#allocation8 + $0x30] sm:$0xf]
    %v309 = vld [vmem:[#allocation8 + $0x34] sm:$0xf]
    %v310 = vld [vmem:[#allocation8 + $0x38] sm:$0xf]
    %v311 = vld [vmem:[#allocation8 + $0x3c] sm:$0xf]
    %v312 = vld [vmem:[%s6] sm:$0x1]
    %v314 = vlaneseq
    %v315 = vshrl.u32 %v314, 7
    %v316 = vsub.s32 0, %v315
    %v317 = vrot.slane %v312, %v316
    %v335 = vunpack.c.l.b16 %v296
    %v336 = vunpack.c.l.b16 %v297
    %v337 = vunpack.c.l.b16 %v298
    %v338 = vunpack.c.l.b16 %v299
    %v339 = vunpack.c.l.b16 %v300
    %v340 = vunpack.c.l.b16 %v301
    %v341 = vunpack.c.l.b16 %v302
    %v342 = vunpack.c.l.b16 %v303
    %v343 = vunpack.c.l.b16 %v304
    %v344 = vunpack.c.l.b16 %v305
    %v345 = vunpack.c.l.b16 %v306
    %v346 = vunpack.c.l.b16 %v307
    %v347 = vunpack.c.l.b16 %v308
    %v348 = vunpack.c.l.b16 %v309
    %v349 = vunpack.c.l.b16 %v310
    %v350 = vunpack.c.l.b16 %v311
    %v351 = vpack.c.b16 %v336, %v335
    %v352 = vpack.c.b16 %v338, %v337
    %v353 = vpack.c.b16 %v340, %v339
    %v354 = vpack.c.b16 %v342, %v341
    %v355 = vpack.c.b16 %v344, %v343
    %v356 = vpack.c.b16 %v346, %v345
    %v357 = vpack.c.b16 %v348, %v347
    %v358 = vpack.c.b16 %v350, %v349
    %367 = vmatprep.subr.bf16.mxu0 0
    %368 = vmatpush1.bf16.msra.mxu0 %v358
    %369 = vmatprep.subr.bf16.mxu0 0
    %370 = vmatpush1.bf16.msra.mxu0 %v357
    %371 = vmatprep.subr.bf16.mxu0 0
    %372 = vmatpush1.bf16.msra.mxu0 %v356
    %373 = vmatprep.subr.bf16.mxu0 0
    %374 = vmatpush1.bf16.msra.mxu0 %v355
    %375 = vmatprep.subr.bf16.mxu0 0
    %376 = vmatpush1.bf16.msra.mxu0 %v354
    %377 = vmatprep.subr.bf16.mxu0 0
    %378 = vmatpush1.bf16.msra.mxu0 %v353
    %379 = vmatprep.subr.bf16.mxu0 0
    %380 = vmatpush1.bf16.msra.mxu0 %v352
    %381 = vmatprep.subr.bf16.mxu0 0
    %382 = vmatpush1.bf16.msra.mxu0 %v351
    %383 = vmatprep.subr.bf16.mxu0 0
    %384 = vmatpush2.bf16.msra.mxu0 0
    %385 = vmatprep.subr.bf16.mxu0 0
    %386 = vmatpush2.bf16.msra.mxu0 0
    %387 = vmatprep.subr.bf16.mxu0 0
    %388 = vmatpush2.bf16.msra.mxu0 0
    %389 = vmatprep.subr.bf16.mxu0 0
    %390 = vmatpush2.bf16.msra.mxu0 0
    %391 = vmatprep.subr.bf16.mxu0 0
    %392 = vmatpush2.bf16.msra.mxu0 0
    %393 = vmatprep.subr.bf16.mxu0 0
    %394 = vmatpush2.bf16.msra.mxu0 0
    %395 = vmatprep.subr.bf16.mxu0 0
    %396 = vmatpush2.bf16.msra.mxu0 0
    %397 = vmatprep.subr.bf16.mxu0 0
    %398 = vmatpush2.bf16.msra.mxu0 0
    %399 = vmatprep.mubr.bf16.mxu0 0
    %400 = vmatmul.mubr.bf16.gmra.mxu0 %v295
    %v401 = vpop.f32.mrf.mxu0
    %v402 = vadd.f32 %v317, %v401
    %v403 = vpop.f32.mrf.mxu0
    %v404 = vpop.f32.mrf.mxu0
    %v405 = vpop.f32.mrf.mxu0
    %406 = vdwg.mxu0
    %v407 = vmax.f32 %v402, 0.0
    %v408 = vpack.c.bf16 %v407, %v407
    %v409 = vld [vmem:[#allocation10] sm:$0xf]
    %v410 = vld [vmem:[#allocation10 + $0x4] sm:$0xf]
    %v411 = vld [vmem:[#allocation10 + $0x8] sm:$0xf]
    %v412 = vld [vmem:[#allocation10 + $0xc] sm:$0xf]
    %v413 = vld [vmem:[#allocation10 + $0x10] sm:$0xf]
    %v414 = vld [vmem:[#allocation10 + $0x14] sm:$0xf]
    %v415 = vld [vmem:[#allocation10 + $0x18] sm:$0xf]
    %v416 = vld [vmem:[#allocation10 + $0x1c] sm:$0xf]
    %v417 = vld [vmem:[#allocation10 + $0x20] sm:$0xf]
    %v418 = vld [vmem:[#allocation10 + $0x24] sm:$0xf]
    %v419 = vld [vmem:[#allocation10 + $0x28] sm:$0xf]
    %v420 = vld [vmem:[#allocation10 + $0x2c] sm:$0xf]
    %v421 = vld [vmem:[#allocation10 + $0x30] sm:$0xf]
    %v422 = vld [vmem:[#allocation10 + $0x34] sm:$0xf]
    %v423 = vld [vmem:[#allocation10 + $0x38] sm:$0xf]
    %v424 = vld [vmem:[#allocation10 + $0x3c] sm:$0xf]
    %v425 = vld [vmem:[%s8] sm:$0x1]
    %v427 = vlaneseq
    %v428 = vshrl.u32 %v427, 7
    %v429 = vsub.s32 0, %v428
    %v430 = vrot.slane %v425, %v429
    %v448 = vunpack.c.l.b16 %v409
    %v449 = vunpack.c.l.b16 %v410
    %v450 = vunpack.c.l.b16 %v411
    %v451 = vunpack.c.l.b16 %v412
    %v452 = vunpack.c.l.b16 %v413
    %v453 = vunpack.c.l.b16 %v414
    %v454 = vunpack.c.l.b16 %v415
    %v455 = vunpack.c.l.b16 %v416
    %v456 = vunpack.c.l.b16 %v417
    %v457 = vunpack.c.l.b16 %v418
    %v458 = vunpack.c.l.b16 %v419
    %v459 = vunpack.c.l.b16 %v420
    %v460 = vunpack.c.l.b16 %v421
    %v461 = vunpack.c.l.b16 %v422
    %v462 = vunpack.c.l.b16 %v423
    %v463 = vunpack.c.l.b16 %v424
    %v464 = vpack.c.b16 %v449, %v448
    %v465 = vpack.c.b16 %v451, %v450
    %v466 = vpack.c.b16 %v453, %v452
    %v467 = vpack.c.b16 %v455, %v454
    %v468 = vpack.c.b16 %v457, %v456
    %v469 = vpack.c.b16 %v459, %v458
    %v470 = vpack.c.b16 %v461, %v460
    %v471 = vpack.c.b16 %v463, %v462
    %480 = vmatprep.subr.bf16.mxu0 0
    %481 = vmatpush1.bf16.msra.mxu0 %v471
    %482 = vmatprep.subr.bf16.mxu0 0
    %483 = vmatpush1.bf16.msra.mxu0 %v470
    %484 = vmatprep.subr.bf16.mxu0 0
    %485 = vmatpush1.bf16.msra.mxu0 %v469
    %486 = vmatprep.subr.bf16.mxu0 0
    %487 = vmatpush1.bf16.msra.mxu0 %v468
    %488 = vmatprep.subr.bf16.mxu0 0
    %489 = vmatpush1.bf16.msra.mxu0 %v467
    %490 = vmatprep.subr.bf16.mxu0 0
    %491 = vmatpush1.bf16.msra.mxu0 %v466
    %492 = vmatprep.subr.bf16.mxu0 0
    %493 = vmatpush1.bf16.msra.mxu0 %v465
    %494 = vmatprep.subr.bf16.mxu0 0
    %495 = vmatpush1.bf16.msra.mxu0 %v464
    %496 = vmatprep.subr.bf16.mxu0 0
    %497 = vmatpush2.bf16.msra.mxu0 0
    %498 = vmatprep.subr.bf16.mxu0 0
    %499 = vmatpush2.bf16.msra.mxu0 0
    %500 = vmatprep.subr.bf16.mxu0 0
    %501 = vmatpush2.bf16.msra.mxu0 0
    %502 = vmatprep.subr.bf16.mxu0 0
    %503 = vmatpush2.bf16.msra.mxu0 0
    %504 = vmatprep.subr.bf16.mxu0 0
    %505 = vmatpush2.bf16.msra.mxu0 0
    %506 = vmatprep.subr.bf16.mxu0 0
    %507 = vmatpush2.bf16.msra.mxu0 0
    %508 = vmatprep.subr.bf16.mxu0 0
    %509 = vmatpush2.bf16.msra.mxu0 0
    %510 = vmatprep.subr.bf16.mxu0 0
    %511 = vmatpush2.bf16.msra.mxu0 0
    %512 = vmatprep.mubr.bf16.mxu0 0
    %513 = vmatmul.mubr.bf16.gmra.mxu0 %v408
    %v514 = vpop.f32.mrf.mxu0
    %v515 = vadd.f32 %v430, %v514
    %v516 = vpop.f32.mrf.mxu0
    %v517 = vpop.f32.mrf.mxu0
    %v518 = vpop.f32.mrf.mxu0
    %519 = vdwg.mxu0
    %v520 = vmax.f32 %v515, 0.0
    %v521 = vpack.c.bf16 %v520, %v520
    %v522 = vld [vmem:[#allocation11] sm:$0xf]
    %v523 = vld [vmem:[#allocation11 + $0x4] sm:$0xf]
    %v524 = vld [vmem:[#allocation11 + $0x8] sm:$0xf]
    %v525 = vld [vmem:[#allocation11 + $0xc] sm:$0xf]
    %v526 = vld [vmem:[#allocation11 + $0x10] sm:$0xf]
    %v527 = vld [vmem:[#allocation11 + $0x14] sm:$0xf]
    %v528 = vld [vmem:[#allocation11 + $0x18] sm:$0xf]
    %v529 = vld [vmem:[#allocation11 + $0x1c] sm:$0xf]
    %v530 = vld [vmem:[#allocation11 + $0x20] sm:$0xf]
    %v531 = vld [vmem:[#allocation11 + $0x24] sm:$0xf]
    %v532 = vld [vmem:[#allocation11 + $0x28] sm:$0xf]
    %v533 = vld [vmem:[#allocation11 + $0x2c] sm:$0xf]
    %v534 = vld [vmem:[#allocation11 + $0x30] sm:$0xf]
    %v535 = vld [vmem:[#allocation11 + $0x34] sm:$0xf]
    %v536 = vld [vmem:[#allocation11 + $0x38] sm:$0xf]
    %v537 = vld [vmem:[#allocation11 + $0x3c] sm:$0xf]
    %v538 = vld [vmem:[%s10] sm:$0x1]
    %v540 = vlaneseq
    %v541 = vshrl.u32 %v540, 7
    %v542 = vsub.s32 0, %v541
    %v543 = vrot.slane %v538, %v542
    %v561 = vunpack.c.l.b16 %v522
    %v562 = vunpack.c.l.b16 %v523
    %v563 = vunpack.c.l.b16 %v524
    %v564 = vunpack.c.l.b16 %v525
    %v565 = vunpack.c.l.b16 %v526
    %v566 = vunpack.c.l.b16 %v527
    %v567 = vunpack.c.l.b16 %v528
    %v568 = vunpack.c.l.b16 %v529
    %v569 = vunpack.c.l.b16 %v530
    %v570 = vunpack.c.l.b16 %v531
    %v571 = vunpack.c.l.b16 %v532
    %v572 = vunpack.c.l.b16 %v533
    %v573 = vunpack.c.l.b16 %v534
    %v574 = vunpack.c.l.b16 %v535
    %v575 = vunpack.c.l.b16 %v536
    %v576 = vunpack.c.l.b16 %v537
    %v577 = vpack.c.b16 %v562, %v561
    %v578 = vpack.c.b16 %v564, %v563
    %v579 = vpack.c.b16 %v566, %v565
    %v580 = vpack.c.b16 %v568, %v567
    %v581 = vpack.c.b16 %v570, %v569
    %v582 = vpack.c.b16 %v572, %v571
    %v583 = vpack.c.b16 %v574, %v573
    %v584 = vpack.c.b16 %v576, %v575
    %593 = vmatprep.subr.bf16.mxu0 0
    %594 = vmatpush1.bf16.msra.mxu0 %v584
    %595 = vmatprep.subr.bf16.mxu0 0
    %596 = vmatpush1.bf16.msra.mxu0 %v583
    %597 = vmatprep.subr.bf16.mxu0 0
    %598 = vmatpush1.bf16.msra.mxu0 %v582
    %599 = vmatprep.subr.bf16.mxu0 0
    %600 = vmatpush1.bf16.msra.mxu0 %v581
    %601 = vmatprep.subr.bf16.mxu0 0
    %602 = vmatpush1.bf16.msra.mxu0 %v580
    %603 = vmatprep.subr.bf16.mxu0 0
    %604 = vmatpush1.bf16.msra.mxu0 %v579
    %605 = vmatprep.subr.bf16.mxu0 0
    %606 = vmatpush1.bf16.msra.mxu0 %v578
    %607 = vmatprep.subr.bf16.mxu0 0
    %608 = vmatpush1.bf16.msra.mxu0 %v577
    %609 = vmatprep.subr.bf16.mxu0 0
    %610 = vmatpush2.bf16.msra.mxu0 0
    %611 = vmatprep.subr.bf16.mxu0 0
    %612 = vmatpush2.bf16.msra.mxu0 0
    %613 = vmatprep.subr.bf16.mxu0 0
    %614 = vmatpush2.bf16.msra.mxu0 0
    %615 = vmatprep.subr.bf16.mxu0 0
    %616 = vmatpush2.bf16.msra.mxu0 0
    %617 = vmatprep.subr.bf16.mxu0 0
    %618 = vmatpush2.bf16.msra.mxu0 0
    %619 = vmatprep.subr.bf16.mxu0 0
    %620 = vmatpush2.bf16.msra.mxu0 0
    %621 = vmatprep.subr.bf16.mxu0 0
    %622 = vmatpush2.bf16.msra.mxu0 0
    %623 = vmatprep.subr.bf16.mxu0 0
    %624 = vmatpush2.bf16.msra.mxu0 0
    %625 = vmatprep.mubr.bf16.mxu0 0
    %626 = vmatmul.mubr.bf16.gmra.mxu0 %v521
    %v627 = vpop.f32.mrf.mxu0
    %v628 = vadd.f32 %v543, %v627
    %v629 = vpop.f32.mrf.mxu0
    %v630 = vpop.f32.mrf.mxu0
    %v631 = vpop.f32.mrf.mxu0
    %632 = vdwg.mxu0
    %633 = vst [vmem:[#allocation13] sm:$0xff] %v628
    // Predicated region
    $region70: #{four_layer_network.1} parent=1 // pred_check
      _
    $region71: #{four_layer_network.1} parent=1 // pred_check_branch
      %635 = sbr.rel (0) target = $region73
    $region72: #{four_layer_network.1} parent=1 // pred_region
      %s637 = ssub.s32 128, 128
      %638 = vsyncadd [#allocation4], %s637
      %s640 = sshll.u32 [#allocation13], 4
      %s641 = int_to_ptr.vmem [resolvable:$true] %s640
      %643 = dma.vmem_to_hbm [thread:$0]  %s641, 128, %s11, [#allocation4]
    $region73: #{four_layer_network.1} parent=1 // pred_fallthru
      _
    // Predicated region
    $region74: #{four_layer_network.1} parent=1 // pred_check
      _
    $region75: #{four_layer_network.1} parent=1 // pred_check_branch
      %645 = sbr.rel (0) target = $region77
    $region76: #{four_layer_network.1} parent=1 // pred_region
      %646 = dma.done [#allocation4], 128
    $region77: #{four_layer_network.1} parent=1 // pred_fallthru
      _
    %647 = vsyncpa [#allocation3], 1
    %648 = vsyncpa [#allocation6], 1
    %649 = vsyncpa [#allocation9], 1
    %650 = vsyncpa [#allocation12], 1
    %651 = vsyncpa [#allocation4], 1

</llo_original>
